<compile_context>
chip_gen: v7x
topology: tpu7x:2x2x1
jax: 0.10.0
libtpu: 0.0.40
codegen_flags: <defaults>
</compile_context>

<pallas_src>
import jax
import jax.numpy as jnp
from jax.experimental import pallas as pl
from jax.experimental.pallas import tpu as pltpu


def _cdiv(a: int, b: int) -> int:
    return (a + b - 1) // b


def _round_up(x: int, m: int) -> int:
    return _cdiv(x, m) * m


def _vmem_capacity_bytes() -> int:
    try:
        cap = getattr(pltpu.get_tpu_info(), "vmem_capacity_bytes", None)
        if cap:
            return int(cap)
    except Exception:
        pass
    return 64 * 1024 * 1024  # conservative default (v7x per-TC VMEM)


def _pick_tile(extent: int, cap: int, min_tiles: int = 1) -> int:
    """Largest multiple-of-128 tile <= cap, balanced over >= min_tiles grid steps."""
    cap = max(128, min(cap, _round_up(extent, 128)))
    n_tiles = max(min_tiles, _cdiv(extent, cap))
    return max(128, _round_up(_cdiv(extent, n_tiles), 128))


def zero_conv1d_kernel(x_ref, w_ref, b_ref, o_ref):
    # x_ref : (C_in,  T)  lane-dense column tile
    # w_ref : (C_out, C_in)  resident weight (kernel_size=1 squeezed)
    # b_ref : (C_out, 1)     bias, broadcast along the lane axis
    # o_ref : (C_out, T)     lane-dense output tile (unmasked stores when T % 128 == 0)
    y = jnp.dot(w_ref[...], x_ref[...], preferred_element_type=jnp.float32) + b_ref[...]
    o_ref[...] = y.astype(o_ref.dtype)


def zero_conv1d(x, weight, bias, *, force_pallas: bool = False):
    """x: (N, C_in, L), weight: (C_out, C_in, 1), bias: (C_out,) -> (N, C_out, L)."""
    N, C_in, L = x.shape
    C_out = weight.shape[0]
    w2d = weight.reshape(C_out, C_in)
    b2d = bias.reshape(C_out, 1)

    # Small-problem bypass: Pallas launch overhead + a K=C_in matmul wasting >95% of the
    # MXU lose outright to fused XLA for tiny shapes (ZeroConv1d's typical glue usage).
    if not force_pallas and (N * L <= 2048 or min(C_in, C_out) <= 8):
        return jnp.einsum("oc,ncl->nol", w2d, x) + bias[None, :, None]

    itemsize = jnp.dtype(x.dtype).itemsize
    vmem_cap = _vmem_capacity_bytes()
    # Pallas double-buffers every input: the resident W (+ b) still costs 2x its size.
    weight_bytes = 2 * (C_out * C_in + C_out) * itemsize
    per_col_bytes = 2 * (C_in + C_out) * itemsize          # double-buffered x + out tiles
    tile_budget = max(128 * per_col_bytes, vmem_cap // 2 - weight_bytes)
    tile_cap = (tile_budget // per_col_bytes) // 128 * 128
    # HBM efficiency saturates by ~512-1024 lane columns; cap per-step footprint.
    tile_cap = max(128, min(tile_cap, 4096))
    vmem_limit_bytes = int(min(vmem_cap * 3 // 4, 96 * 1024 * 1024))

    cost = pl.CostEstimate(
        flops=2 * C_out * C_in * N * L,
        transcendentals=0,
        bytes_accessed=itemsize * (C_in * N * L + C_out * C_in + C_out + C_out * N * L),
    )

    def _params(sem):
        return pltpu.CompilerParams(dimension_semantics=sem,
                                    vmem_limit_bytes=vmem_limit_bytes)

    # TODO(synk): for very large weights (C_out*C_in*itemsize approaching v7x's 64 MiB VMEM),
    # add C_out / C_in grid axes with an f32 accumulator instead of keeping W fully resident.

    if L >= 128:
        # Native-layout path: grid over (batch, L-tiles); no wrapper transpose, no pad.
        tile_l = _pick_tile(L, tile_cap, min_tiles=2 if N == 1 else 1)
        grid = (N, _cdiv(L, tile_l))
        return pl.pallas_call(
            zero_conv1d_kernel,
            out_shape=jax.ShapeDtypeStruct((N, C_out, L), x.dtype),
            grid=grid,
            in_specs=[
                pl.BlockSpec((None, C_in, tile_l), lambda n, j: (n, 0, j)),
                pl.BlockSpec((C_out, C_in), lambda n, j: (0, 0)),
                pl.BlockSpec((C_out, 1), lambda n, j: (0, 0)),
            ],
            out_specs=pl.BlockSpec((None, C_out, tile_l), lambda n, j: (n, 0, j)),
            compiler_params=_params(("parallel", "parallel")),
            cost_estimate=cost,
        )(x, w2d, b2d)

    # Short-L fallback: collapse (N, L) into one lane-dense axis M = N*L so tiles still fill
    # 128 lanes. No explicit pad — Pallas masks the partial final tile's stores; out-of-range
    # input columns only affect out-of-range output columns (column-wise independent).
    M = N * L
    x2d = jnp.transpose(x, (1, 0, 2)).reshape(C_in, M)
    tile_m = _pick_tile(M, tile_cap, min_tiles=2)
    grid = (_cdiv(M, tile_m),)
    y2d = pl.pallas_call(
        zero_conv1d_kernel,
        out_shape=jax.ShapeDtypeStruct((C_out, M), x.dtype),
        grid=grid,
        in_specs=[
            pl.BlockSpec((C_in, tile_m), lambda j: (0, j)),
            pl.BlockSpec((C_out, C_in), lambda j: (0, 0)),
            pl.BlockSpec((C_out, 1), lambda j: (0, 0)),
        ],
        out_specs=pl.BlockSpec((C_out, tile_m), lambda j: (0, j)),
        compiler_params=_params(("parallel",)),
        cost_estimate=cost,
    )(x2d, w2d, b2d)
    return jnp.transpose(y2d.reshape(C_out, N, L), (1, 0, 2))


if __name__ == "__main__":
    key = jax.random.PRNGKey(0)
    kx, kw, kb, kx2, kw2, kb2 = jax.random.split(key, 6)

    # 1) ZeroConv1d init semantics at the module's tiny shapes: zero weight/bias -> all zeros.
    #    (Dispatches through the small-problem einsum bypass by design.)
    N, C_in, C_out, L = 2, 4, 6, 16
    x = jax.random.normal(kx, (N, C_in, L), dtype=jnp.float32)
    w0 = jnp.zeros((C_out, C_in, 1), dtype=jnp.float32)
    b0 = jnp.zeros((C_out,), dtype=jnp.float32)
    out0 = jax.block_until_ready(zero_conv1d(x, w0, b0))
    assert out0.shape == (N, C_out, L)
    assert jnp.allclose(out0, 0.0)

    # 2) Same tiny shape, nonzero params, forced through the collapsed-M Pallas path (L < 128).
    w1 = jax.random.normal(kw, (C_out, C_in, 1), dtype=jnp.float32)
    b1 = jax.random.normal(kb, (C_out,), dtype=jnp.float32)
    out1 = jax.block_until_ready(zero_conv1d(x, w1, b1, force_pallas=True))
    ref1 = jnp.einsum("oc,ncl->nol", w1[:, :, 0], x) + b1[None, :, None]
    assert jnp.allclose(out1, ref1, atol=1e-5, rtol=1e-5)

    # 3) Longer-L case exercising the native (N, C_in, L) Pallas path (no wrapper transposes).
    N2, C2_in, C2_out, L2 = 2, 32, 48, 384
    x2 = jax.random.normal(kx2, (N2, C2_in, L2), dtype=jnp.float32)
    w2 = jax.random.normal(kw2, (C2_out, C2_in, 1), dtype=jnp.float32)
    b2 = jax.random.normal(kb2, (C2_out,), dtype=jnp.float32)
    out2 = jax.block_until_ready(zero_conv1d(x2, w2, b2, force_pallas=True))
    ref2 = jnp.einsum("oc,ncl->nol", w2[:, :, 0], x2) + b2[None, :, None]
    assert out2.shape == (N2, C2_out, L2)
    assert jnp.allclose(out2, ref2, atol=1e-4, rtol=1e-5)

    print("KERNEL_OK")
</pallas_src>

<mosaic_0001>
module attributes {stable_mosaic.version = 11 : i64} {
  func.func @zero_conv1d_kernel(%arg0: i32, %arg1: memref<4x128xf32, #tpu.memory_space<vmem>>, %arg2: memref<6x4xf32, #tpu.memory_space<vmem>>, %arg3: memref<6x1xf32, #tpu.memory_space<vmem>>, %arg4: memref<6x128xf32, #tpu.memory_space<vmem>>) attributes {dimension_semantics = [#tpu.dimension_semantics<parallel>], iteration_bounds = array<i64: 1>, scalar_prefetch = 0 : i64, scratch_operands = 0 : i64, tpu.core_type = #tpu.core_type<tc>, window_params = [{transform_indices = @transform_0, window_bounds = array<i64: 4, 128>}, {pipeline_mode = #tpu.pipeline_mode<synchronous>, transform_indices = @transform_1, window_bounds = array<i64: 6, 4>}, {pipeline_mode = #tpu.pipeline_mode<synchronous>, transform_indices = @transform_2, window_bounds = array<i64: 6, 1>}, {transform_indices = @transform_3, window_bounds = array<i64: 6, 128>}]} {
    %c0 = arith.constant 0 : index
    %c0_0 = arith.constant 0 : index
    %0 = vector.load %arg2[%c0, %c0_0] : memref<6x4xf32, #tpu.memory_space<vmem>>, vector<6x4xf32>
    %c0_1 = arith.constant 0 : index
    %c0_2 = arith.constant 0 : index
    %1 = vector.load %arg1[%c0_1, %c0_2] : memref<4x128xf32, #tpu.memory_space<vmem>>, vector<4x128xf32>
    %cst = arith.constant dense<0.000000e+00> : vector<6x128xf32>
    %2 = tpu.matmul %0, %1, %cst {dimension_numbers = #tpu.dot_dimension_numbers<[1], [0], [0], [1], [0, 0, 1, 1], [], []>} : vector<6x4xf32>, vector<4x128xf32>, vector<6x128xf32> -> vector<6x128xf32>
    %c0_3 = arith.constant 0 : index
    %c0_4 = arith.constant 0 : index
    %3 = vector.load %arg3[%c0_3, %c0_4] : memref<6x1xf32, #tpu.memory_space<vmem>>, vector<6x1xf32>
    %4 = vector.broadcast %3 : vector<6x1xf32> to vector<6x128xf32>
    %5 = arith.addf %2, %4 : vector<6x128xf32>
    %c0_5 = arith.constant 0 : index
    %c0_6 = arith.constant 0 : index
    %6 = vector.load %arg4[%c0_5, %c0_6] : memref<6x128xf32, #tpu.memory_space<vmem>>, vector<6x128xf32>
    tpu.vector_store %arg4[%c0_5, %c0_6], %5 {strides = array<i32>} : memref<6x128xf32, #tpu.memory_space<vmem>>, vector<6x128xf32>,
    return
  }
  func.func @transform_0(%arg0: i32) -> (i32, i32) {
    %c0_i32 = arith.constant 0 : i32
    %c0_i32_0 = arith.constant 0 : i32
    return %c0_i32, %arg0 : i32, i32
  }
  func.func @transform_1(%arg0: i32) -> (i32, i32) {
    %c0_i32 = arith.constant 0 : i32
    %c0_i32_0 = arith.constant 0 : i32
    %c0_i32_1 = arith.constant 0 : i32
    return %c0_i32, %c0_i32_0 : i32, i32
  }
  func.func @transform_2(%arg0: i32) -> (i32, i32) {
    %c0_i32 = arith.constant 0 : i32
    %c0_i32_0 = arith.constant 0 : i32
    %c0_i32_1 = arith.constant 0 : i32
    return %c0_i32, %c0_i32_0 : i32, i32
  }
  func.func @transform_3(%arg0: i32) -> (i32, i32) {
    %c0_i32 = arith.constant 0 : i32
    %c0_i32_0 = arith.constant 0 : i32
    return %c0_i32, %arg0 : i32, i32
  }
}

</mosaic_0001>

<llo_original>
// kernel: tpu_custom_call.1
$region0: #{tpu_custom_call.1}
  #allocation0 [shape = 'u32[]', space=smem, size = 0x4, offset = 0x4, fixed_abs, tag = 'smem constant byte address 0x4 - core index']
  #allocation1 [shape = 'u32[144,128]{1,0:T(1,128)}', space=vmem, size = 0x12000, scoped, tag = 'internal scratch']
  %s0 = inlined_call_operand.vmem [shape: f32[4,32], index: 0, kind: input, shape index: {}]
  %s1 = inlined_call_operand.vmem [shape: f32[6,4], index: 1, kind: input, shape index: {}]
  %s2 = inlined_call_operand.vmem [shape: f32[6,1], index: 2, kind: input, shape index: {}]
  %s3 = inlined_call_operand.hbm [shape: f32[6,32], index: 3, kind: output, shape index: {}]
  %s4 = sld [smem:[#allocation0]]
  $region22: #{tpu_custom_call.1} parent=0
    _
  %s6 = ssub.s32 1, %s4
  %s7 = scalar_select 0, %s6, %s4
  $region1: #{tpu_custom_call.1} parent=0
    #allocation2 [shape = 'u8[4096]{0}', space=vmem, size = 0x1000, scoped, tag = 'output window, operand 0, single buffered']
    #allocation3 [shape = 's32[1]{0}', space=sflag, size = 0x4, scoped, tag = 'scoped memory for tpu_custom_call.1']
    %8 = vsyncpa [#allocation3], 0
    // Predicated region
    $region2: #{tpu_custom_call.1} parent=1 // pred_check
      _
    $region3: #{tpu_custom_call.1} parent=1 // pred_check_branch
      %10 = sbr.rel (0) target = $region5
    $region4: #{tpu_custom_call.1} parent=1 // pred_region
      _
    $region5: #{tpu_custom_call.1} parent=1 // pred_fallthru
      _
    // Predicated region
    $region6: #{tpu_custom_call.1} parent=1 // pred_check
      _
    $region7: #{tpu_custom_call.1} parent=1 // pred_check_branch
      %12 = sbr.rel (0) target = $region9
    $region8: #{tpu_custom_call.1} parent=1 // pred_region
      _
    $region9: #{tpu_custom_call.1} parent=1 // pred_fallthru
      _
    // Predicated region
    $region10: #{tpu_custom_call.1} parent=1 // pred_check
      _
    $region11: #{tpu_custom_call.1} parent=1 // pred_check_branch
      %14 = sbr.rel (0) target = $region13
    $region12: #{tpu_custom_call.1} parent=1 // pred_region
      _
    $region13: #{tpu_custom_call.1} parent=1 // pred_fallthru
      _
    %v15 = vld [vmem:[%s1] sm:$0x3f]
    %v16 = vld [vmem:[%s0] sm:$0xf]
    %v17 = vld [vmem:[%s2] sm:$0x3f]
    %19 = vset.pattern.permute.xlu0 0
    %20 = vperm.xlu0 %19, %v17
    %v21 = vpop.permute.xlu0 %20
    %vm23 = vcmask 31744
    %v25 = vsel %vm23, %v15, 0
    %vm27 = vcmask 1043456
    %v29 = vsel %vm27, %v16, 0
    %31 = vmatprep.subr.mxu0 0.0
    %32 = vmatpush1.msra.mxu0 %v29
    %33 = vmatprep.subr.mxu0 0.0
    %34 = vmatpush1.msra.mxu0 0.0
    %35 = vmatprep.subr.mxu0 0.0
    %36 = vmatpush1.msra.mxu0 0.0
    %37 = vmatprep.subr.mxu0 0.0
    %38 = vmatpush1.msra.mxu0 0.0
    %39 = vmatprep.subr.mxu0 0.0
    %40 = vmatpush1.msra.mxu0 0.0
    %41 = vmatprep.subr.mxu0 0.0
    %42 = vmatpush1.msra.mxu0 0.0
    %43 = vmatprep.subr.mxu0 0.0
    %44 = vmatpush1.msra.mxu0 0.0
    %45 = vmatprep.subr.mxu0 0.0
    %46 = vmatpush1.msra.mxu0 0.0
    %47 = vmatprep.subr.mxu0 0.0
    %48 = vmatpush1.msra.mxu0 0.0
    %49 = vmatprep.subr.mxu0 0.0
    %50 = vmatpush1.msra.mxu0 0.0
    %51 = vmatprep.subr.mxu0 0.0
    %52 = vmatpush1.msra.mxu0 0.0
    %53 = vmatprep.subr.mxu0 0.0
    %54 = vmatpush1.msra.mxu0 0.0
    %55 = vmatprep.subr.mxu0 0.0
    %56 = vmatpush1.msra.mxu0 0.0
    %57 = vmatprep.subr.mxu0 0.0
    %58 = vmatpush1.msra.mxu0 0.0
    %59 = vmatprep.subr.mxu0 0.0
    %60 = vmatpush1.msra.mxu0 0.0
    %61 = vmatprep.subr.mxu0 0.0
    %62 = vmatpush1.msra.mxu0 0.0
    %63 = vmatprep.subr.mxu0 0.0
    %64 = vmatpush1.msra.mxu0 0.0
    %65 = vmatprep.subr.mxu0 0.0
    %66 = vmatpush1.msra.mxu0 0.0
    %67 = vmatprep.subr.mxu0 0.0
    %68 = vmatpush1.msra.mxu0 0.0
    %69 = vmatprep.subr.mxu0 0.0
    %70 = vmatpush1.msra.mxu0 0.0
    %71 = vmatprep.subr.mxu0 0.0
    %72 = vmatpush1.msra.mxu0 0.0
    %73 = vmatprep.subr.mxu0 0.0
    %74 = vmatpush1.msra.mxu0 0.0
    %75 = vmatprep.subr.mxu0 0.0
    %76 = vmatpush1.msra.mxu0 0.0
    %77 = vmatprep.subr.mxu0 0.0
    %78 = vmatpush1.msra.mxu0 0.0
    %79 = vmatprep.subr.mxu0 0.0
    %80 = vmatpush1.msra.mxu0 0.0
    %81 = vmatprep.subr.mxu0 0.0
    %82 = vmatpush1.msra.mxu0 0.0
    %83 = vmatprep.subr.mxu0 0.0
    %84 = vmatpush1.msra.mxu0 0.0
    %85 = vmatprep.subr.mxu0 0.0
    %86 = vmatpush1.msra.mxu0 0.0
    %87 = vmatprep.subr.mxu0 0.0
    %88 = vmatpush1.msra.mxu0 0.0
    %89 = vmatprep.subr.mxu0 0.0
    %90 = vmatpush1.msra.mxu0 0.0
    %91 = vmatprep.subr.mxu0 0.0
    %92 = vmatpush1.msra.mxu0 0.0
    %93 = vmatprep.subr.mxu0 0.0
    %94 = vmatpush1.msra.mxu0 0.0
    %95 = vmatprep.mubr.f32.mxu0 0.0
    %96 = vmatmul.mubr.f32.gmra.mrb[0].mxu0 %v25
    %v97 = vpop.f32.mrb[0].mxu0
    %v98 = vadd.f32 %v21, %v97
    %v99 = vpop.f32.mrb[0].mxu0
    %100 = vdwg.mxu0
    %101 = vst [vmem:[#allocation2] sm:$0x3f] %v98
    // Predicated region
    $region14: #{tpu_custom_call.1} parent=1 // pred_check
      _
    $region15: #{tpu_custom_call.1} parent=1 // pred_check_branch
      %103 = sbr.rel (0) target = $region17
    $region16: #{tpu_custom_call.1} parent=1 // pred_region
      %s105 = ssub.s32 128, 128
      %106 = vsyncadd [#allocation3], %s105
      %s108 = sshll.u32 [#allocation2], 4
      %s109 = int_to_ptr.vmem [resolvable:$true] %s108
      %111 = dma.vmem_to_hbm [thread:$0]  %s109, 128, %s3, [#allocation3]
    $region17: #{tpu_custom_call.1} parent=1 // pred_fallthru
      _
    // Predicated region
    $region18: #{tpu_custom_call.1} parent=1 // pred_check
      _
    $region19: #{tpu_custom_call.1} parent=1 // pred_check_branch
      %113 = sbr.rel (0) target = $region21
    $region20: #{tpu_custom_call.1} parent=1 // pred_region
      %114 = dma.done [#allocation3], 128
    $region21: #{tpu_custom_call.1} parent=1 // pred_fallthru
      _
    %115 = vsyncpa [#allocation3], 1

</llo_original>
